<compile_context>
chip_gen: v7x
topology: tpu7x:2x2x1
jax: 0.10.0
libtpu: 0.0.40
codegen_flags: <defaults>
</compile_context>

<pallas_src>
import functools
import math

import jax
import jax.numpy as jnp
from jax import lax
from jax.experimental import pallas as pl
from jax.experimental.pallas import tpu as pltpu

_NEG = -1.0e30  # sentinel for padded sparsemax-axis entries (self-excluding)


def _round_up(v, m):
    return ((v + m - 1) // m) * m


def _sparsemax_kernel(x_ref, o_ref, *, d, unroll):
    dp, tn = x_ref.shape
    x = x_ref[...].astype(jnp.float32)                                # (Dp, TN)

    # Valid-row mask (real sparsemax entries) along the sublane axis.
    valid = lax.broadcasted_iota(jnp.int32, (dp, tn), 0) < d          # (Dp, TN)

    # Per-column max over valid rows only, then shift (as in the torch code).
    xm = jnp.max(jnp.where(valid, x, -jnp.inf), axis=0, keepdims=True)  # (1, TN)
    z = x - xm                                                        # (Dp, TN)

    # cond_i = 1 + sum_j [z_j > z_i] * (z_i - z_j), accumulated one j-row at a
    # time: fused compare+select+add over a 2-D working set only.
    def body(j, acc):
        zj = x_ref[pl.ds(j, 1), :].astype(jnp.float32) - xm           # (1, TN)
        return acc + jnp.where(zj > z, z - zj, 0.0)                   # (Dp, TN)

    ssum = lax.fori_loop(0, d, body, jnp.zeros((dp, tn), jnp.float32),
                         unroll=unroll)
    cond = 1.0 + ssum

    supp = jnp.where((cond > 0.0) & valid, 1.0, 0.0)                  # (Dp, TN)
    k = jnp.sum(supp, axis=0, keepdims=True)                          # (1, TN), >= 1
    s = jnp.sum(supp * z, axis=0, keepdims=True)                      # (1, TN)
    tau = (s - 1.0) / k
    o_ref[...] = jnp.maximum(z - tau, 0.0).astype(o_ref.dtype)


def sparsemax_pallas(x, dim=-1, tile_n=None):
    """Apply sparsemax along `dim` (matches the PyTorch module's forward)."""
    if not jnp.issubdtype(x.dtype, jnp.floating):
        x = x.astype(jnp.float32)
    out_dtype = x.dtype

    # NOTE: for dim != -1 this moveaxis (plus the transpose below) is an
    # HBM-level relayout done by XLA outside the kernel; it is O(N*D) traffic
    # vs the kernel's O(N*D^2) compute, so it is acceptable layout plumbing.
    x_moved = jnp.moveaxis(x, dim, -1)
    moved_shape = x_moved.shape
    d = moved_shape[-1]
    n = math.prod(moved_shape[:-1]) if len(moved_shape) > 1 else 1

    # Lane-dense layout: sparsemax axis -> sublanes, batch -> lanes.
    xt = x_moved.reshape(n, d).T                                      # (d, n)

    dp = _round_up(d, 8)
    if tile_n is None:
        tile_n = min(512, _round_up(max(n, 1), 128))
    tile_n = max(128, _round_up(tile_n, 128))
    # Keep double-buffered in/out blocks (+ in-kernel f32 temporaries) well
    # under the v7x 32 MiB scoped-VMEM budget.
    while tile_n > 128 and 8 * dp * tile_n * 4 > 24 * 1024 * 1024:
        tile_n -= 128
    n_pad = _round_up(max(n, 1), tile_n)

    xt_p = jnp.pad(xt, ((0, dp - d), (0, n_pad - n)), constant_values=_NEG)

    unroll = d if d <= 32 else 8
    kernel = functools.partial(_sparsemax_kernel, d=d, unroll=unroll)

    out_t = pl.pallas_call(
        kernel,
        out_shape=jax.ShapeDtypeStruct((dp, n_pad), out_dtype),
        grid=(n_pad // tile_n,),
        in_specs=[pl.BlockSpec((dp, tile_n), lambda i: (0, i))],
        out_specs=pl.BlockSpec((dp, tile_n), lambda i: (0, i)),
        compiler_params=pltpu.CompilerParams(
            dimension_semantics=("parallel",),
            vmem_limit_bytes=32 * 1024 * 1024),
    )(xt_p)

    out = out_t[:d, :n].T.reshape(moved_shape)
    return jnp.moveaxis(out, -1, dim)


def sparsemax_ref(x, dim=-1):
    """Plain-JAX reference mirroring the PyTorch sort/cumsum implementation."""
    z = jnp.moveaxis(x, dim, -1)
    z = z - jnp.max(z, axis=-1, keepdims=True)
    zs = -jnp.sort(-z, axis=-1)                                       # descending
    d = z.shape[-1]
    rng = jnp.arange(1, d + 1, dtype=z.dtype)
    bound = 1.0 + rng * zs
    css = jnp.cumsum(zs, axis=-1)
    is_gt = (bound > css).astype(z.dtype)
    k = jnp.max(is_gt * rng, axis=-1, keepdims=True)
    taus = (jnp.sum(is_gt * zs, axis=-1, keepdims=True) - 1.0) / k
    out = jnp.maximum(z - taus, 0.0)
    return jnp.moveaxis(out, -1, dim)


if __name__ == "__main__":
    key = jax.random.PRNGKey(0)
    k1, k2, k3 = jax.random.split(key, 3)

    # Main case: sparsemax over the last dim (default of the torch module).
    x = jax.random.normal(k1, (2, 4, 16, 16), dtype=jnp.float32)
    out = jax.block_until_ready(sparsemax_pallas(x, dim=-1))
    ref = sparsemax_ref(x, dim=-1)
    assert out.shape == x.shape
    assert jnp.allclose(out, ref, atol=1e-5, rtol=1e-5)
    assert jnp.allclose(jnp.sum(out, axis=-1), 1.0, atol=1e-5)
    assert bool(jnp.all(out >= 0.0))

    # Exercise sublane/lane padding and the rolled (unroll=8) j-loop path.
    x2 = jax.random.normal(k2, (8, 40), dtype=jnp.float32)
    out2 = jax.block_until_ready(sparsemax_pallas(x2, dim=-1))
    assert jnp.allclose(out2, sparsemax_ref(x2, dim=-1), atol=1e-5, rtol=1e-5)

    # Exercise dim != -1.
    x3 = jax.random.normal(k3, (3, 5, 4), dtype=jnp.float32)
    out3 = jax.block_until_ready(sparsemax_pallas(x3, dim=1))
    assert jnp.allclose(out3, sparsemax_ref(x3, dim=1), atol=1e-5, rtol=1e-5)

    print("KERNEL_OK")
</pallas_src>

<mosaic_0001>
module attributes {stable_mosaic.version = 11 : i64} {
  func.func @_sparsemax_kernel(%arg0: i32, %arg1: memref<16x128xf32, #tpu.memory_space<vmem>>, %arg2: memref<16x128xf32, #tpu.memory_space<vmem>>) attributes {dimension_semantics = [#tpu.dimension_semantics<parallel>], iteration_bounds = array<i64: 1>, scalar_prefetch = 0 : i64, scratch_operands = 0 : i64, tpu.core_type = #tpu.core_type<tc>, window_params = [{transform_indices = @transform_0, window_bounds = array<i64: 16, 128>}, {transform_indices = @transform_1, window_bounds = array<i64: 16, 128>}]} {
    %c0 = arith.constant 0 : index
    %c0_0 = arith.constant 0 : index
    %0 = vector.load %arg1[%c0, %c0_0] : memref<16x128xf32, #tpu.memory_space<vmem>>, vector<16x128xf32>
    %1 = tpu.iota {dimensions = array<i32: 0>} : vector<16x128xi32>
    %c16_i32 = arith.constant 16 : i32
    %2 = vector.broadcast %c16_i32 : i32 to vector<16x128xi32>
    %3 = arith.cmpi slt, %1, %2 : vector<16x128xi32>
    %cst = arith.constant 0xFF800000 : f32
    %4 = vector.broadcast %cst : f32 to vector<16x128xf32>
    %5 = arith.select %3, %0, %4 : vector<16x128xi1>, vector<16x128xf32>
    %cst_1 = arith.constant dense<0xFF800000> : vector<128xf32>
    %6 = vector.multi_reduction <maximumf>, %5, %cst_1 [0] : vector<16x128xf32> to vector<128xf32>
    %7 = vector.shape_cast %6 : vector<128xf32> to vector<1x128xf32>
    %8 = vector.broadcast %7 : vector<1x128xf32> to vector<16x128xf32>
    %9 = arith.subf %0, %8 : vector<16x128xf32>
    %cst_2 = arith.constant 0.000000e+00 : f32
    %10 = vector.broadcast %cst_2 : f32 to vector<16x128xf32>
    %c0_i32 = arith.constant 0 : i32
    %11 = arith.index_cast %c0_i32 : i32 to index
    %c0_3 = arith.constant 0 : index
    %12 = vector.load %arg1[%11, %c0_3] : memref<16x128xf32, #tpu.memory_space<vmem>>, vector<1x128xf32>
    %13 = arith.subf %12, %7 : vector<1x128xf32>
    %14 = vector.broadcast %13 : vector<1x128xf32> to vector<16x128xf32>
    %15 = arith.cmpf ogt, %14, %9 : vector<16x128xf32>
    %16 = vector.broadcast %13 : vector<1x128xf32> to vector<16x128xf32>
    %17 = arith.subf %9, %16 : vector<16x128xf32>
    %cst_4 = arith.constant 0.000000e+00 : f32
    %18 = vector.broadcast %cst_4 : f32 to vector<16x128xf32>
    %19 = arith.select %15, %17, %18 : vector<16x128xi1>, vector<16x128xf32>
    %20 = arith.addf %10, %19 : vector<16x128xf32>
    %c1_i32 = arith.constant 1 : i32
    %21 = arith.index_cast %c1_i32 : i32 to index
    %c0_5 = arith.constant 0 : index
    %22 = vector.load %arg1[%21, %c0_5] : memref<16x128xf32, #tpu.memory_space<vmem>>, vector<1x128xf32>
    %23 = arith.subf %22, %7 : vector<1x128xf32>
    %24 = vector.broadcast %23 : vector<1x128xf32> to vector<16x128xf32>
    %25 = arith.cmpf ogt, %24, %9 : vector<16x128xf32>
    %26 = vector.broadcast %23 : vector<1x128xf32> to vector<16x128xf32>
    %27 = arith.subf %9, %26 : vector<16x128xf32>
    %cst_6 = arith.constant 0.000000e+00 : f32
    %28 = vector.broadcast %cst_6 : f32 to vector<16x128xf32>
    %29 = arith.select %25, %27, %28 : vector<16x128xi1>, vector<16x128xf32>
    %30 = arith.addf %20, %29 : vector<16x128xf32>
    %c2_i32 = arith.constant 2 : i32
    %31 = arith.index_cast %c2_i32 : i32 to index
    %c0_7 = arith.constant 0 : index
    %32 = vector.load %arg1[%31, %c0_7] : memref<16x128xf32, #tpu.memory_space<vmem>>, vector<1x128xf32>
    %33 = arith.subf %32, %7 : vector<1x128xf32>
    %34 = vector.broadcast %33 : vector<1x128xf32> to vector<16x128xf32>
    %35 = arith.cmpf ogt, %34, %9 : vector<16x128xf32>
    %36 = vector.broadcast %33 : vector<1x128xf32> to vector<16x128xf32>
    %37 = arith.subf %9, %36 : vector<16x128xf32>
    %cst_8 = arith.constant 0.000000e+00 : f32
    %38 = vector.broadcast %cst_8 : f32 to vector<16x128xf32>
    %39 = arith.select %35, %37, %38 : vector<16x128xi1>, vector<16x128xf32>
    %40 = arith.addf %30, %39 : vector<16x128xf32>
    %c3_i32 = arith.constant 3 : i32
    %41 = arith.index_cast %c3_i32 : i32 to index
    %c0_9 = arith.constant 0 : index
    %42 = vector.load %arg1[%41, %c0_9] : memref<16x128xf32, #tpu.memory_space<vmem>>, vector<1x128xf32>
    %43 = arith.subf %42, %7 : vector<1x128xf32>
    %44 = vector.broadcast %43 : vector<1x128xf32> to vector<16x128xf32>
    %45 = arith.cmpf ogt, %44, %9 : vector<16x128xf32>
    %46 = vector.broadcast %43 : vector<1x128xf32> to vector<16x128xf32>
    %47 = arith.subf %9, %46 : vector<16x128xf32>
    %cst_10 = arith.constant 0.000000e+00 : f32
    %48 = vector.broadcast %cst_10 : f32 to vector<16x128xf32>
    %49 = arith.select %45, %47, %48 : vector<16x128xi1>, vector<16x128xf32>
    %50 = arith.addf %40, %49 : vector<16x128xf32>
    %c4_i32 = arith.constant 4 : i32
    %51 = arith.index_cast %c4_i32 : i32 to index
    %c0_11 = arith.constant 0 : index
    %52 = vector.load %arg1[%51, %c0_11] : memref<16x128xf32, #tpu.memory_space<vmem>>, vector<1x128xf32>
    %53 = arith.subf %52, %7 : vector<1x128xf32>
    %54 = vector.broadcast %53 : vector<1x128xf32> to vector<16x128xf32>
    %55 = arith.cmpf ogt, %54, %9 : vector<16x128xf32>
    %56 = vector.broadcast %53 : vector<1x128xf32> to vector<16x128xf32>
    %57 = arith.subf %9, %56 : vector<16x128xf32>
    %cst_12 = arith.constant 0.000000e+00 : f32
    %58 = vector.broadcast %cst_12 : f32 to vector<16x128xf32>
    %59 = arith.select %55, %57, %58 : vector<16x128xi1>, vector<16x128xf32>
    %60 = arith.addf %50, %59 : vector<16x128xf32>
    %c5_i32 = arith.constant 5 : i32
    %61 = arith.index_cast %c5_i32 : i32 to index
    %c0_13 = arith.constant 0 : index
    %62 = vector.load %arg1[%61, %c0_13] : memref<16x128xf32, #tpu.memory_space<vmem>>, vector<1x128xf32>
    %63 = arith.subf %62, %7 : vector<1x128xf32>
    %64 = vector.broadcast %63 : vector<1x128xf32> to vector<16x128xf32>
    %65 = arith.cmpf ogt, %64, %9 : vector<16x128xf32>
    %66 = vector.broadcast %63 : vector<1x128xf32> to vector<16x128xf32>
    %67 = arith.subf %9, %66 : vector<16x128xf32>
    %cst_14 = arith.constant 0.000000e+00 : f32
    %68 = vector.broadcast %cst_14 : f32 to vector<16x128xf32>
    %69 = arith.select %65, %67, %68 : vector<16x128xi1>, vector<16x128xf32>
    %70 = arith.addf %60, %69 : vector<16x128xf32>
    %c6_i32 = arith.constant 6 : i32
    %71 = arith.index_cast %c6_i32 : i32 to index
    %c0_15 = arith.constant 0 : index
    %72 = vector.load %arg1[%71, %c0_15] : memref<16x128xf32, #tpu.memory_space<vmem>>, vector<1x128xf32>
    %73 = arith.subf %72, %7 : vector<1x128xf32>
    %74 = vector.broadcast %73 : vector<1x128xf32> to vector<16x128xf32>
    %75 = arith.cmpf ogt, %74, %9 : vector<16x128xf32>
    %76 = vector.broadcast %73 : vector<1x128xf32> to vector<16x128xf32>
    %77 = arith.subf %9, %76 : vector<16x128xf32>
    %cst_16 = arith.constant 0.000000e+00 : f32
    %78 = vector.broadcast %cst_16 : f32 to vector<16x128xf32>
    %79 = arith.select %75, %77, %78 : vector<16x128xi1>, vector<16x128xf32>
    %80 = arith.addf %70, %79 : vector<16x128xf32>
    %c7_i32 = arith.constant 7 : i32
    %81 = arith.index_cast %c7_i32 : i32 to index
    %c0_17 = arith.constant 0 : index
    %82 = vector.load %arg1[%81, %c0_17] : memref<16x128xf32, #tpu.memory_space<vmem>>, vector<1x128xf32>
    %83 = arith.subf %82, %7 : vector<1x128xf32>
    %84 = vector.broadcast %83 : vector<1x128xf32> to vector<16x128xf32>
    %85 = arith.cmpf ogt, %84, %9 : vector<16x128xf32>
    %86 = vector.broadcast %83 : vector<1x128xf32> to vector<16x128xf32>
    %87 = arith.subf %9, %86 : vector<16x128xf32>
    %cst_18 = arith.constant 0.000000e+00 : f32
    %88 = vector.broadcast %cst_18 : f32 to vector<16x128xf32>
    %89 = arith.select %85, %87, %88 : vector<16x128xi1>, vector<16x128xf32>
    %90 = arith.addf %80, %89 : vector<16x128xf32>
    %c8_i32 = arith.constant 8 : i32
    %91 = arith.index_cast %c8_i32 : i32 to index
    %c0_19 = arith.constant 0 : index
    %92 = vector.load %arg1[%91, %c0_19] : memref<16x128xf32, #tpu.memory_space<vmem>>, vector<1x128xf32>
    %93 = arith.subf %92, %7 : vector<1x128xf32>
    %94 = vector.broadcast %93 : vector<1x128xf32> to vector<16x128xf32>
    %95 = arith.cmpf ogt, %94, %9 : vector<16x128xf32>
    %96 = vector.broadcast %93 : vector<1x128xf32> to vector<16x128xf32>
    %97 = arith.subf %9, %96 : vector<16x128xf32>
    %cst_20 = arith.constant 0.000000e+00 : f32
    %98 = vector.broadcast %cst_20 : f32 to vector<16x128xf32>
    %99 = arith.select %95, %97, %98 : vector<16x128xi1>, vector<16x128xf32>
    %100 = arith.addf %90, %99 : vector<16x128xf32>
    %c9_i32 = arith.constant 9 : i32
    %101 = arith.index_cast %c9_i32 : i32 to index
    %c0_21 = arith.constant 0 : index
    %102 = vector.load %arg1[%101, %c0_21] : memref<16x128xf32, #tpu.memory_space<vmem>>, vector<1x128xf32>
    %103 = arith.subf %102, %7 : vector<1x128xf32>
    %104 = vector.broadcast %103 : vector<1x128xf32> to vector<16x128xf32>
    %105 = arith.cmpf ogt, %104, %9 : vector<16x128xf32>
    %106 = vector.broadcast %103 : vector<1x128xf32> to vector<16x128xf32>
    %107 = arith.subf %9, %106 : vector<16x128xf32>
    %cst_22 = arith.constant 0.000000e+00 : f32
    %108 = vector.broadcast %cst_22 : f32 to vector<16x128xf32>
    %109 = arith.select %105, %107, %108 : vector<16x128xi1>, vector<16x128xf32>
    %110 = arith.addf %100, %109 : vector<16x128xf32>
    %c10_i32 = arith.constant 10 : i32
    %111 = arith.index_cast %c10_i32 : i32 to index
    %c0_23 = arith.constant 0 : index
    %112 = vector.load %arg1[%111, %c0_23] : memref<16x128xf32, #tpu.memory_space<vmem>>, vector<1x128xf32>
    %113 = arith.subf %112, %7 : vector<1x128xf32>
    %114 = vector.broadcast %113 : vector<1x128xf32> to vector<16x128xf32>
    %115 = arith.cmpf ogt, %114, %9 : vector<16x128xf32>
    %116 = vector.broadcast %113 : vector<1x128xf32> to vector<16x128xf32>
    %117 = arith.subf %9, %116 : vector<16x128xf32>
    %cst_24 = arith.constant 0.000000e+00 : f32
    %118 = vector.broadcast %cst_24 : f32 to vector<16x128xf32>
    %119 = arith.select %115, %117, %118 : vector<16x128xi1>, vector<16x128xf32>
    %120 = arith.addf %110, %119 : vector<16x128xf32>
    %c11_i32 = arith.constant 11 : i32
    %121 = arith.index_cast %c11_i32 : i32 to index
    %c0_25 = arith.constant 0 : index
    %122 = vector.load %arg1[%121, %c0_25] : memref<16x128xf32, #tpu.memory_space<vmem>>, vector<1x128xf32>
    %123 = arith.subf %122, %7 : vector<1x128xf32>
    %124 = vector.broadcast %123 : vector<1x128xf32> to vector<16x128xf32>
    %125 = arith.cmpf ogt, %124, %9 : vector<16x128xf32>
    %126 = vector.broadcast %123 : vector<1x128xf32> to vector<16x128xf32>
    %127 = arith.subf %9, %126 : vector<16x128xf32>
    %cst_26 = arith.constant 0.000000e+00 : f32
    %128 = vector.broadcast %cst_26 : f32 to vector<16x128xf32>
    %129 = arith.select %125, %127, %128 : vector<16x128xi1>, vector<16x128xf32>
    %130 = arith.addf %120, %129 : vector<16x128xf32>
    %c12_i32 = arith.constant 12 : i32
    %131 = arith.index_cast %c12_i32 : i32 to index
    %c0_27 = arith.constant 0 : index
    %132 = vector.load %arg1[%131, %c0_27] : memref<16x128xf32, #tpu.memory_space<vmem>>, vector<1x128xf32>
    %133 = arith.subf %132, %7 : vector<1x128xf32>
    %134 = vector.broadcast %133 : vector<1x128xf32> to vector<16x128xf32>
    %135 = arith.cmpf ogt, %134, %9 : vector<16x128xf32>
    %136 = vector.broadcast %133 : vector<1x128xf32> to vector<16x128xf32>
    %137 = arith.subf %9, %136 : vector<16x128xf32>
    %cst_28 = arith.constant 0.000000e+00 : f32
    %138 = vector.broadcast %cst_28 : f32 to vector<16x128xf32>
    %139 = arith.select %135, %137, %138 : vector<16x128xi1>, vector<16x128xf32>
    %140 = arith.addf %130, %139 : vector<16x128xf32>
    %c13_i32 = arith.constant 13 : i32
    %141 = arith.index_cast %c13_i32 : i32 to index
    %c0_29 = arith.constant 0 : index
    %142 = vector.load %arg1[%141, %c0_29] : memref<16x128xf32, #tpu.memory_space<vmem>>, vector<1x128xf32>
    %143 = arith.subf %142, %7 : vector<1x128xf32>
    %144 = vector.broadcast %143 : vector<1x128xf32> to vector<16x128xf32>
    %145 = arith.cmpf ogt, %144, %9 : vector<16x128xf32>
    %146 = vector.broadcast %143 : vector<1x128xf32> to vector<16x128xf32>
    %147 = arith.subf %9, %146 : vector<16x128xf32>
    %cst_30 = arith.constant 0.000000e+00 : f32
    %148 = vector.broadcast %cst_30 : f32 to vector<16x128xf32>
    %149 = arith.select %145, %147, %148 : vector<16x128xi1>, vector<16x128xf32>
    %150 = arith.addf %140, %149 : vector<16x128xf32>
    %c14_i32 = arith.constant 14 : i32
    %151 = arith.index_cast %c14_i32 : i32 to index
    %c0_31 = arith.constant 0 : index
    %152 = vector.load %arg1[%151, %c0_31] : memref<16x128xf32, #tpu.memory_space<vmem>>, vector<1x128xf32>
    %153 = arith.subf %152, %7 : vector<1x128xf32>
    %154 = vector.broadcast %153 : vector<1x128xf32> to vector<16x128xf32>
    %155 = arith.cmpf ogt, %154, %9 : vector<16x128xf32>
    %156 = vector.broadcast %153 : vector<1x128xf32> to vector<16x128xf32>
    %157 = arith.subf %9, %156 : vector<16x128xf32>
    %cst_32 = arith.constant 0.000000e+00 : f32
    %158 = vector.broadcast %cst_32 : f32 to vector<16x128xf32>
    %159 = arith.select %155, %157, %158 : vector<16x128xi1>, vector<16x128xf32>
    %160 = arith.addf %150, %159 : vector<16x128xf32>
    %c15_i32 = arith.constant 15 : i32
    %161 = arith.index_cast %c15_i32 : i32 to index
    %c0_33 = arith.constant 0 : index
    %162 = vector.load %arg1[%161, %c0_33] : memref<16x128xf32, #tpu.memory_space<vmem>>, vector<1x128xf32>
    %163 = arith.subf %162, %7 : vector<1x128xf32>
    %164 = vector.broadcast %163 : vector<1x128xf32> to vector<16x128xf32>
    %165 = arith.cmpf ogt, %164, %9 : vector<16x128xf32>
    %166 = vector.broadcast %163 : vector<1x128xf32> to vector<16x128xf32>
    %167 = arith.subf %9, %166 : vector<16x128xf32>
    %cst_34 = arith.constant 0.000000e+00 : f32
    %168 = vector.broadcast %cst_34 : f32 to vector<16x128xf32>
    %169 = arith.select %165, %167, %168 : vector<16x128xi1>, vector<16x128xf32>
    %170 = arith.addf %160, %169 : vector<16x128xf32>
    %c16_i32_35 = arith.constant 16 : i32
    %cst_36 = arith.constant 1.000000e+00 : f32
    %171 = vector.broadcast %cst_36 : f32 to vector<16x128xf32>
    %172 = arith.addf %171, %170 : vector<16x128xf32>
    %cst_37 = arith.constant 0.000000e+00 : f32
    %173 = vector.broadcast %cst_37 : f32 to vector<16x128xf32>
    %174 = arith.cmpf ogt, %172, %173 : vector<16x128xf32>
    %175 = arith.andi %174, %3 : vector<16x128xi1>
    %cst_38 = arith.constant 1.000000e+00 : f32
    %cst_39 = arith.constant 0.000000e+00 : f32
    %176 = vector.broadcast %cst_38 : f32 to vector<16x128xf32>
    %177 = vector.broadcast %cst_39 : f32 to vector<16x128xf32>
    %178 = arith.select %175, %176, %177 : vector<16x128xi1>, vector<16x128xf32>
    %cst_40 = arith.constant dense<0.000000e+00> : vector<128xf32>
    %179 = vector.multi_reduction <add>, %178, %cst_40 [0] : vector<16x128xf32> to vector<128xf32>
    %180 = vector.shape_cast %179 : vector<128xf32> to vector<1x128xf32>
    %181 = arith.mulf %178, %9 : vector<16x128xf32>
    %cst_41 = arith.constant dense<0.000000e+00> : vector<128xf32>
    %182 = vector.multi_reduction <add>, %181, %cst_41 [0] : vector<16x128xf32> to vector<128xf32>
    %183 = vector.shape_cast %182 : vector<128xf32> to vector<1x128xf32>
    %cst_42 = arith.constant 1.000000e+00 : f32
    %184 = vector.broadcast %cst_42 : f32 to vector<1x128xf32>
    %185 = arith.subf %183, %184 : vector<1x128xf32>
    %186 = arith.divf %185, %180 : vector<1x128xf32>
    %187 = vector.broadcast %186 : vector<1x128xf32> to vector<16x128xf32>
    %188 = arith.subf %9, %187 : vector<16x128xf32>
    %cst_43 = arith.constant 0.000000e+00 : f32
    %189 = vector.broadcast %cst_43 : f32 to vector<16x128xf32>
    %190 = arith.maximumf %188, %189 : vector<16x128xf32>
    %c0_44 = arith.constant 0 : index
    %c0_45 = arith.constant 0 : index
    %191 = vector.load %arg2[%c0_44, %c0_45] : memref<16x128xf32, #tpu.memory_space<vmem>>, vector<16x128xf32>
    tpu.vector_store %arg2[%c0_44, %c0_45], %190 {strides = array<i32>} : memref<16x128xf32, #tpu.memory_space<vmem>>, vector<16x128xf32>,
    return
  }
  func.func @transform_0(%arg0: i32) -> (i32, i32) {
    %c0_i32 = arith.constant 0 : i32
    %c0_i32_0 = arith.constant 0 : i32
    return %c0_i32, %arg0 : i32, i32
  }
  func.func @transform_1(%arg0: i32) -> (i32, i32) {
    %c0_i32 = arith.constant 0 : i32
    %c0_i32_0 = arith.constant 0 : i32
    return %c0_i32, %arg0 : i32, i32
  }
}

</mosaic_0001>

<llo_original>
// kernel: tpu_custom_call.1
$region0: #{tpu_custom_call.1}
  #allocation0 [shape = 'u32[]', space=smem, size = 0x4, offset = 0x4, fixed_abs, tag = 'smem constant byte address 0x4 - core index']
  #allocation1 [shape = 'u32[144,128]{1,0:T(1,128)}', space=vmem, size = 0x12000, scoped, tag = 'internal scratch']
  %s0 = inlined_call_operand.hbm [shape: f32[16,128], index: 0, kind: input, shape index: {}]
  %s1 = inlined_call_operand.hbm [shape: f32[16,128], index: 1, kind: output, shape index: {}]
  %s2 = sld [smem:[#allocation0]]
  $region18: #{tpu_custom_call.1} parent=0
    _
  %s4 = ssub.s32 1, %s2
  %s5 = scalar_select 0, %s4, %s2
  $region1: #{tpu_custom_call.1} parent=0
    #allocation2 [shape = 'u8[8192]{0}', space=vmem, size = 0x2000, scoped, tag = 'input window, operand 0, single buffered']
    #allocation3 [shape = 's32[1]{0}', space=sflag, size = 0x4, scoped, tag = 'scoped memory for tpu_custom_call.1']
    #allocation4 [shape = 's32[1]{0}', space=sflag, size = 0x4, scoped, tag = 'scoped memory for tpu_custom_call.1']
    #allocation5 [shape = 'u8[8192]{0}', space=vmem, size = 0x2000, scoped, tag = 'output window, operand 0, single buffered']
    %6 = vsyncpa [#allocation3], 0
    %7 = vsyncpa [#allocation4], 0
    // Predicated region
    $region2: #{tpu_custom_call.1} parent=1 // pred_check
      _
    $region3: #{tpu_custom_call.1} parent=1 // pred_check_branch
      %9 = sbr.rel (0) target = $region5
    $region4: #{tpu_custom_call.1} parent=1 // pred_region
      %s11 = ssub.s32 256, 256
      %12 = vsyncadd [#allocation3], %s11
      %s13 = sshll.u32 [#allocation2], 4
      %s14 = int_to_ptr.vmem [resolvable:$true] %s13
      %19 = dma.hbm_to_vmem [thread:$0]  %s0, 256, %s14, [#allocation3], 128, 128, 8
    $region5: #{tpu_custom_call.1} parent=1 // pred_fallthru
      _
    // Predicated region
    $region6: #{tpu_custom_call.1} parent=1 // pred_check
      _
    $region7: #{tpu_custom_call.1} parent=1 // pred_check_branch
      %21 = sbr.rel (0) target = $region9
    $region8: #{tpu_custom_call.1} parent=1 // pred_region
      %22 = dma.done [#allocation3], 256
    $region9: #{tpu_custom_call.1} parent=1 // pred_fallthru
      _
    %v23 = vld [vmem:[#allocation2] sm:$0xff]
    %v24 = vld [vmem:[#allocation2 + $0x8] sm:$0xff]
    %v25 = vlaneseq
    %v26 = vshrl.u32 %v25, 7
    %v27 = vadd.s32 %v26, 8
    %vm28 = vcmp.lt.s32.totalorder %v26, 16
    %vm29 = vcmp.lt.s32.totalorder %v27, 16
    %v30 = vsel %vm28, %v23, -inf
    %v31 = vsel %vm29, %v24, -inf
    %v32 = vmax.f32 %v30, %v31
    %v33 = vrot.slane %v32, 4
    %v34 = vmax.f32 %v32, %v33
    %v35 = vrot.slane %v34, 2
    %v36 = vmax.f32 %v34, %v35
    %v37 = vrot.slane %v36, 1
    %v38 = vmax.f32 %v36, %v37
    %v39 = vsub.f32 %v23, %v38
    %v40 = vsub.f32 %v24, %v38
    %v41 = vld [vmem:[#allocation2] sm:$0x1]
    %v42 = vsub.f32 %v41, %v38
    %v43 = vlaneseq
    %v44 = vshrl.u32 %v43, 7
    %v45 = vsub.s32 0, %v44
    %v46 = vrot.slane %v42, %v45
    %vm47 = vcmp.gt.f32.partialorder %v46, %v39
    %vm48 = vcmp.gt.f32.partialorder %v46, %v40
    %v49 = vsub.f32 %v39, %v46
    %v50 = vsub.f32 %v40, %v46
    %v51 = vsel %vm47, %v49, 0.0
    %v52 = vsel %vm48, %v50, 0.0
    %v53 = vadd.f32 %v51, 0.0
    %v54 = vadd.f32 %v52, 0.0
    %v55 = vld [vmem:[#allocation2 + $0x1] sm:$0x1]
    %v56 = vsub.f32 %v55, %v38
    %v57 = vlaneseq
    %v58 = vshrl.u32 %v57, 7
    %v59 = vsub.s32 0, %v58
    %v60 = vrot.slane %v56, %v59
    %vm61 = vcmp.gt.f32.partialorder %v60, %v39
    %vm62 = vcmp.gt.f32.partialorder %v60, %v40
    %v63 = vsub.f32 %v39, %v60
    %v64 = vsub.f32 %v40, %v60
    %v65 = vsel %vm61, %v63, 0.0
    %v66 = vsel %vm62, %v64, 0.0
    %v67 = vadd.f32 %v53, %v65
    %v68 = vadd.f32 %v54, %v66
    %v69 = vld [vmem:[#allocation2 + $0x2] sm:$0x1]
    %v70 = vsub.f32 %v69, %v38
    %v71 = vlaneseq
    %v72 = vshrl.u32 %v71, 7
    %v73 = vsub.s32 0, %v72
    %v74 = vrot.slane %v70, %v73
    %vm75 = vcmp.gt.f32.partialorder %v74, %v39
    %vm76 = vcmp.gt.f32.partialorder %v74, %v40
    %v77 = vsub.f32 %v39, %v74
    %v78 = vsub.f32 %v40, %v74
    %v79 = vsel %vm75, %v77, 0.0
    %v80 = vsel %vm76, %v78, 0.0
    %v81 = vadd.f32 %v67, %v79
    %v82 = vadd.f32 %v68, %v80
    %v83 = vld [vmem:[#allocation2 + $0x3] sm:$0x1]
    %v84 = vsub.f32 %v83, %v38
    %v85 = vlaneseq
    %v86 = vshrl.u32 %v85, 7
    %v87 = vsub.s32 0, %v86
    %v88 = vrot.slane %v84, %v87
    %vm89 = vcmp.gt.f32.partialorder %v88, %v39
    %vm90 = vcmp.gt.f32.partialorder %v88, %v40
    %v91 = vsub.f32 %v39, %v88
    %v92 = vsub.f32 %v40, %v88
    %v93 = vsel %vm89, %v91, 0.0
    %v94 = vsel %vm90, %v92, 0.0
    %v95 = vadd.f32 %v81, %v93
    %v96 = vadd.f32 %v82, %v94
    %v97 = vld [vmem:[#allocation2 + $0x4] sm:$0x1]
    %v98 = vsub.f32 %v97, %v38
    %v99 = vlaneseq
    %v100 = vshrl.u32 %v99, 7
    %v101 = vsub.s32 0, %v100
    %v102 = vrot.slane %v98, %v101
    %vm103 = vcmp.gt.f32.partialorder %v102, %v39
    %vm104 = vcmp.gt.f32.partialorder %v102, %v40
    %v105 = vsub.f32 %v39, %v102
    %v106 = vsub.f32 %v40, %v102
    %v107 = vsel %vm103, %v105, 0.0
    %v108 = vsel %vm104, %v106, 0.0
    %v109 = vadd.f32 %v95, %v107
    %v110 = vadd.f32 %v96, %v108
    %v111 = vld [vmem:[#allocation2 + $0x5] sm:$0x1]
    %v112 = vsub.f32 %v111, %v38
    %v113 = vlaneseq
    %v114 = vshrl.u32 %v113, 7
    %v115 = vsub.s32 0, %v114
    %v116 = vrot.slane %v112, %v115
    %vm117 = vcmp.gt.f32.partialorder %v116, %v39
    %vm118 = vcmp.gt.f32.partialorder %v116, %v40
    %v119 = vsub.f32 %v39, %v116
    %v120 = vsub.f32 %v40, %v116
    %v121 = vsel %vm117, %v119, 0.0
    %v122 = vsel %vm118, %v120, 0.0
    %v123 = vadd.f32 %v109, %v121
    %v124 = vadd.f32 %v110, %v122
    %v125 = vld [vmem:[#allocation2 + $0x6] sm:$0x1]
    %v126 = vsub.f32 %v125, %v38
    %v127 = vlaneseq
    %v128 = vshrl.u32 %v127, 7
    %v129 = vsub.s32 0, %v128
    %v130 = vrot.slane %v126, %v129
    %vm131 = vcmp.gt.f32.partialorder %v130, %v39
    %vm132 = vcmp.gt.f32.partialorder %v130, %v40
    %v133 = vsub.f32 %v39, %v130
    %v134 = vsub.f32 %v40, %v130
    %v135 = vsel %vm131, %v133, 0.0
    %v136 = vsel %vm132, %v134, 0.0
    %v137 = vadd.f32 %v123, %v135
    %v138 = vadd.f32 %v124, %v136
    %v139 = vld [vmem:[#allocation2 + $0x7] sm:$0x1]
    %v140 = vsub.f32 %v139, %v38
    %v141 = vlaneseq
    %v142 = vshrl.u32 %v141, 7
    %v143 = vsub.s32 0, %v142
    %v144 = vrot.slane %v140, %v143
    %vm145 = vcmp.gt.f32.partialorder %v144, %v39
    %vm146 = vcmp.gt.f32.partialorder %v144, %v40
    %v147 = vsub.f32 %v39, %v144
    %v148 = vsub.f32 %v40, %v144
    %v149 = vsel %vm145, %v147, 0.0
    %v150 = vsel %vm146, %v148, 0.0
    %v151 = vadd.f32 %v137, %v149
    %v152 = vadd.f32 %v138, %v150
    %v153 = vld [vmem:[#allocation2 + $0x8] sm:$0x1]
    %v154 = vsub.f32 %v153, %v38
    %v155 = vlaneseq
    %v156 = vshrl.u32 %v155, 7
    %v157 = vsub.s32 0, %v156
    %v158 = vrot.slane %v154, %v157
    %vm159 = vcmp.gt.f32.partialorder %v158, %v39
    %vm160 = vcmp.gt.f32.partialorder %v158, %v40
    %v161 = vsub.f32 %v39, %v158
    %v162 = vsub.f32 %v40, %v158
    %v163 = vsel %vm159, %v161, 0.0
    %v164 = vsel %vm160, %v162, 0.0
    %v165 = vadd.f32 %v151, %v163
    %v166 = vadd.f32 %v152, %v164
    %v167 = vld [vmem:[#allocation2 + $0x9] sm:$0x1]
    %v168 = vsub.f32 %v167, %v38
    %v169 = vlaneseq
    %v170 = vshrl.u32 %v169, 7
    %v171 = vsub.s32 0, %v170
    %v172 = vrot.slane %v168, %v171
    %vm173 = vcmp.gt.f32.partialorder %v172, %v39
    %vm174 = vcmp.gt.f32.partialorder %v172, %v40
    %v175 = vsub.f32 %v39, %v172
    %v176 = vsub.f32 %v40, %v172
    %v177 = vsel %vm173, %v175, 0.0
    %v178 = vsel %vm174, %v176, 0.0
    %v179 = vadd.f32 %v165, %v177
    %v180 = vadd.f32 %v166, %v178
    %v181 = vld [vmem:[#allocation2 + $0xa] sm:$0x1]
    %v182 = vsub.f32 %v181, %v38
    %v183 = vlaneseq
    %v184 = vshrl.u32 %v183, 7
    %v185 = vsub.s32 0, %v184
    %v186 = vrot.slane %v182, %v185
    %vm187 = vcmp.gt.f32.partialorder %v186, %v39
    %vm188 = vcmp.gt.f32.partialorder %v186, %v40
    %v189 = vsub.f32 %v39, %v186
    %v190 = vsub.f32 %v40, %v186
    %v191 = vsel %vm187, %v189, 0.0
    %v192 = vsel %vm188, %v190, 0.0
    %v193 = vadd.f32 %v179, %v191
    %v194 = vadd.f32 %v180, %v192
    %v195 = vld [vmem:[#allocation2 + $0xb] sm:$0x1]
    %v196 = vsub.f32 %v195, %v38
    %v197 = vlaneseq
    %v198 = vshrl.u32 %v197, 7
    %v199 = vsub.s32 0, %v198
    %v200 = vrot.slane %v196, %v199
    %vm201 = vcmp.gt.f32.partialorder %v200, %v39
    %vm202 = vcmp.gt.f32.partialorder %v200, %v40
    %v203 = vsub.f32 %v39, %v200
    %v204 = vsub.f32 %v40, %v200
    %v205 = vsel %vm201, %v203, 0.0
    %v206 = vsel %vm202, %v204, 0.0
    %v207 = vadd.f32 %v193, %v205
    %v208 = vadd.f32 %v194, %v206
    %v209 = vld [vmem:[#allocation2 + $0xc] sm:$0x1]
    %v210 = vsub.f32 %v209, %v38
    %v211 = vlaneseq
    %v212 = vshrl.u32 %v211, 7
    %v213 = vsub.s32 0, %v212
    %v214 = vrot.slane %v210, %v213
    %vm215 = vcmp.gt.f32.partialorder %v214, %v39
    %vm216 = vcmp.gt.f32.partialorder %v214, %v40
    %v217 = vsub.f32 %v39, %v214
    %v218 = vsub.f32 %v40, %v214
    %v219 = vsel %vm215, %v217, 0.0
    %v220 = vsel %vm216, %v218, 0.0
    %v221 = vadd.f32 %v207, %v219
    %v222 = vadd.f32 %v208, %v220
    %v223 = vld [vmem:[#allocation2 + $0xd] sm:$0x1]
    %v224 = vsub.f32 %v223, %v38
    %v225 = vlaneseq
    %v226 = vshrl.u32 %v225, 7
    %v227 = vsub.s32 0, %v226
    %v228 = vrot.slane %v224, %v227
    %vm229 = vcmp.gt.f32.partialorder %v228, %v39
    %vm230 = vcmp.gt.f32.partialorder %v228, %v40
    %v231 = vsub.f32 %v39, %v228
    %v232 = vsub.f32 %v40, %v228
    %v233 = vsel %vm229, %v231, 0.0
    %v234 = vsel %vm230, %v232, 0.0
    %v235 = vadd.f32 %v221, %v233
    %v236 = vadd.f32 %v222, %v234
    %v237 = vld [vmem:[#allocation2 + $0xe] sm:$0x1]
    %v238 = vsub.f32 %v237, %v38
    %v239 = vlaneseq
    %v240 = vshrl.u32 %v239, 7
    %v241 = vsub.s32 0, %v240
    %v242 = vrot.slane %v238, %v241
    %vm243 = vcmp.gt.f32.partialorder %v242, %v39
    %vm244 = vcmp.gt.f32.partialorder %v242, %v40
    %v245 = vsub.f32 %v39, %v242
    %v246 = vsub.f32 %v40, %v242
    %v247 = vsel %vm243, %v245, 0.0
    %v248 = vsel %vm244, %v246, 0.0
    %v249 = vadd.f32 %v235, %v247
    %v250 = vadd.f32 %v236, %v248
    %v251 = vld [vmem:[#allocation2 + $0xf] sm:$0x1]
    %v252 = vsub.f32 %v251, %v38
    %v253 = vlaneseq
    %v254 = vshrl.u32 %v253, 7
    %v255 = vsub.s32 0, %v254
    %v256 = vrot.slane %v252, %v255
    %vm257 = vcmp.gt.f32.partialorder %v256, %v39
    %vm258 = vcmp.gt.f32.partialorder %v256, %v40
    %v259 = vsub.f32 %v39, %v256
    %v260 = vsub.f32 %v40, %v256
    %v261 = vsel %vm257, %v259, 0.0
    %v262 = vsel %vm258, %v260, 0.0
    %v263 = vadd.f32 %v249, %v261
    %v264 = vadd.f32 %v250, %v262
    %v265 = vadd.f32 %v263, 1.0
    %v266 = vadd.f32 %v264, 1.0
    %vm267 = vcmp.gt.f32.partialorder %v265, 0.0
    %vm268 = vcmp.gt.f32.partialorder %v266, 0.0
    %vm269 = vmand %vm267, %vm28
    %vm270 = vmand %vm268, %vm29
    %v271 = vsel %vm269, 1.0, 0.0
    %v272 = vsel %vm270, 1.0, 0.0
    %v273 = vadd.f32 %v271, %v272
    %v274 = vrot.slane %v273, 4
    %v275 = vadd.f32 %v273, %v274
    %v276 = vrot.slane %v275, 2
    %v277 = vadd.f32 %v275, %v276
    %v278 = vrot.slane %v277, 1
    %v279 = vadd.f32 %v277, %v278
    %v280 = vmul.f32 %v271, %v39
    %v281 = vmul.f32 %v272, %v40
    %v282 = vadd.f32 %v280, %v281
    %v283 = vrot.slane %v282, 4
    %v284 = vadd.f32 %v282, %v283
    %v285 = vrot.slane %v284, 2
    %v286 = vadd.f32 %v284, %v285
    %v287 = vrot.slane %v286, 1
    %v288 = vadd.f32 %v286, %v287
    %v289 = vsub.f32 %v288, 1.0
    %v290 = vrcp.pop %v279
    %v291 = vmul.f32 %v289, %v290
    %v292 = vsub.f32 %v39, %v291
    %v293 = vsub.f32 %v40, %v291
    %v294 = vmax.f32 %v292, 0.0
    %v295 = vmax.f32 %v293, 0.0
    %296 = vst [vmem:[#allocation5] sm:$0xff] %v294
    %297 = vst [vmem:[#allocation5 + $0x8] sm:$0xff] %v295
    // Predicated region
    $region10: #{tpu_custom_call.1} parent=1 // pred_check
      _
    $region11: #{tpu_custom_call.1} parent=1 // pred_check_branch
      %299 = sbr.rel (0) target = $region13
    $region12: #{tpu_custom_call.1} parent=1 // pred_region
      %s301 = ssub.s32 256, 256
      %302 = vsyncadd [#allocation4], %s301
      %s303 = sshll.u32 [#allocation5], 4
      %s304 = int_to_ptr.vmem [resolvable:$true] %s303
      %309 = dma.vmem_to_hbm [thread:$0]  %s304, 256, %s1, [#allocation4], 128, 128, 8
    $region13: #{tpu_custom_call.1} parent=1 // pred_fallthru
      _
    // Predicated region
    $region14: #{tpu_custom_call.1} parent=1 // pred_check
      _
    $region15: #{tpu_custom_call.1} parent=1 // pred_check_branch
      %311 = sbr.rel (0) target = $region17
    $region16: #{tpu_custom_call.1} parent=1 // pred_region
      %312 = dma.done [#allocation4], 256
    $region17: #{tpu_custom_call.1} parent=1 // pred_fallthru
      _
    %313 = vsyncpa [#allocation3], 1
    %314 = vsyncpa [#allocation4], 1

</llo_original>
